<compile_context>
chip_gen: v6e
topology: v6e:2x2x1
jax: 0.10.0
libtpu: 0.0.40
codegen_flags: <defaults>
</compile_context>

<pallas_src>
import functools

import jax
import jax.numpy as jnp
from jax.experimental import pallas as pl
from jax.experimental.pallas import tpu as pltpu


# ----------------------------------------------------------------------------
# Single-step kernel (exact mirror of LSTMCell.forward)
# ----------------------------------------------------------------------------
def lstm_cell_kernel(x_ref, h_ref, c_ref, wx_ref, wh_ref, b_ref,
                     h_out_ref, c_out_ref, *, precision):
    # Two lane-dense MXU pushes, f32 accumulation.
    pre = jnp.dot(x_ref[...], wx_ref[...],
                  preferred_element_type=jnp.float32, precision=precision)
    pre = pre + jnp.dot(h_ref[...], wh_ref[...],
                        preferred_element_type=jnp.float32, precision=precision)
    pre = pre + b_ref[...]                         # [B, 4H] + [1, 4H]

    H = c_ref.shape[1]
    # Gate order (i, f, g, o) along the lane axis of the fused pre-activation.
    # TODO(synk): at real sizes keep H a multiple of 128 so each gate slice is
    # vreg-aligned (at toy H these are sub-vreg lane slices; negligible here).
    i = jax.nn.sigmoid(pre[:, 0 * H:1 * H])
    f = jax.nn.sigmoid(pre[:, 1 * H:2 * H])
    g = jnp.tanh(pre[:, 2 * H:3 * H])
    o = jax.nn.sigmoid(pre[:, 3 * H:4 * H])

    c = c_ref[...]
    new_c = f * c + i * g
    new_h = o * jnp.tanh(new_c)

    h_out_ref[...] = new_h.astype(h_out_ref.dtype)
    c_out_ref[...] = new_c.astype(c_out_ref.dtype)


def lstm_cell_forward(x, h, c, wx, wh, b_cat):
    """One LSTM cell step, matching LSTMCell.forward.

    x      : [B, In]    input
    h, c   : [B, H]     previous state (state[0], state[1])
    wx     : [In, 4H]   packed x-path weights, gate order (i,f,g,o) on lanes
    wh     : [H, 4H]    packed h-path weights
    b_cat  : [1, 4H]    combined bias (x-path + h-path)
    Returns (output, (new_h, new_c)).
    """
    B = x.shape[0]
    H = h.shape[1]
    mm_dtype = wx.dtype
    precision = (jax.lax.Precision.HIGHEST
                 if mm_dtype == jnp.float32 else None)

    vmem = pl.BlockSpec(memory_space=pltpu.MemorySpace.VMEM)
    new_h, new_c = pl.pallas_call(
        functools.partial(lstm_cell_kernel, precision=precision),
        out_shape=(jax.ShapeDtypeStruct((B, H), jnp.float32),
                   jax.ShapeDtypeStruct((B, H), jnp.float32)),
        in_specs=[vmem] * 6,
        out_specs=(vmem, vmem),
    )(x.astype(mm_dtype), h.astype(mm_dtype), c.astype(jnp.float32),
      wx, wh, b_cat.astype(jnp.float32))

    return new_h, (new_h, new_c)


# ----------------------------------------------------------------------------
# Sequence kernel: grid over (B-blocks, T), Wh VMEM-resident, h/c in scratch.
# The x-projection (x_t @ Wx + b) is hoisted out of the recurrence.
# ----------------------------------------------------------------------------
def lstm_seq_kernel(xp_ref, h0_ref, c0_ref, wh_ref, hs_ref, cs_ref,
                    h_scr, c_scr, *, precision):
    t = pl.program_id(1)

    @pl.when(t == 0)
    def _():
        h_scr[...] = h0_ref[...].astype(h_scr.dtype)
        c_scr[...] = c0_ref[...]

    H = c_scr.shape[1]
    pre = xp_ref[0] + jnp.dot(h_scr[...], wh_ref[...],
                              preferred_element_type=jnp.float32,
                              precision=precision)

    i = jax.nn.sigmoid(pre[:, 0 * H:1 * H])
    f = jax.nn.sigmoid(pre[:, 1 * H:2 * H])
    g = jnp.tanh(pre[:, 2 * H:3 * H])
    o = jax.nn.sigmoid(pre[:, 3 * H:4 * H])

    new_c = f * c_scr[...] + i * g
    new_h = o * jnp.tanh(new_c)

    # h is carried in the matmul dtype (no per-step cast on the recurrent
    # critical path when running bf16); c stays f32.
    h_scr[...] = new_h.astype(h_scr.dtype)
    c_scr[...] = new_c
    hs_ref[0] = new_h.astype(hs_ref.dtype)
    cs_ref[0] = new_c.astype(cs_ref.dtype)


def lstm_sequence_forward(xs, h0, c0, wx, wh, b_cat, *, block_b=None):
    """Apply the LSTM cell over a whole sequence in one pallas_call.

    xs : [T, B, In];  h0, c0 : [B, H]
    Returns (hs [T,B,H], (h_T, c_T)) — per-step outputs + final state,
    identical to looping LSTMCell.forward over t.
    """
    T, B, _ = xs.shape
    H = h0.shape[1]
    mm_dtype = wx.dtype
    precision = (jax.lax.Precision.HIGHEST
                 if mm_dtype == jnp.float32 else None)

    # Hoist the input projection out of the recurrence: one large,
    # MXU-efficient GEMM over all T steps (plain XLA).
    xp = jnp.einsum("tbi,ij->tbj", xs.astype(mm_dtype), wx,
                    preferred_element_type=jnp.float32,
                    precision=precision) + b_cat.astype(jnp.float32)

    tb = B if block_b is None else block_b
    assert B % tb == 0
    grid = (B // tb, T)

    # TODO(synk): for large H, tile the 4H axis of Wh and set
    # pltpu.CompilerParams(vmem_limit_bytes=...) (v7x: 64 MiB VMEM, v5e: 16 MiB
    # scoped default). Not needed at these shapes.
    hs, cs = pl.pallas_call(
        functools.partial(lstm_seq_kernel, precision=precision),
        out_shape=(jax.ShapeDtypeStruct((T, B, H), jnp.float32),
                   jax.ShapeDtypeStruct((T, B, H), jnp.float32)),
        grid_spec=pltpu.PrefetchScalarGridSpec(
            num_scalar_prefetch=0,
            grid=grid,
            in_specs=[
                # x-projection: streamed, one [tb, 4H] slab per step.
                pl.BlockSpec((1, tb, 4 * H), lambda b, t: (t, b, 0)),
                # initial state: constant across t.
                pl.BlockSpec((tb, H), lambda b, t: (b, 0)),
                pl.BlockSpec((tb, H), lambda b, t: (b, 0)),
                # recurrent weights: constant index_map -> VMEM-resident.
                pl.BlockSpec((H, 4 * H), lambda b, t: (0, 0)),
            ],
            out_specs=[
                pl.BlockSpec((1, tb, H), lambda b, t: (t, b, 0)),
                pl.BlockSpec((1, tb, H), lambda b, t: (t, b, 0)),
            ],
            scratch_shapes=[
                pltpu.VMEM((tb, H), mm_dtype),      # h carry
                pltpu.VMEM((tb, H), jnp.float32),   # c carry
            ]),
        compiler_params=pltpu.CompilerParams(
            dimension_semantics=("parallel", "arbitrary")),
    )(xp, h0.astype(jnp.float32), c0.astype(jnp.float32), wh)

    return hs, (hs[-1], cs[-1])


# ----------------------------------------------------------------------------
# Parameters (PyTorch per-gate nn.Linear style) + lane-dense packing
# ----------------------------------------------------------------------------
_GATE_ORDER = ("i", "f", "g", "o")


def init_params(key, input_size, hidden_size):
    """Per-gate Linear params exactly like the PyTorch module's 8 nn.Linear."""
    names = ["ii", "if", "ig", "io", "hi", "hf", "hg", "ho"]
    keys = jax.random.split(key, 2 * len(names))
    params = {}
    for idx, name in enumerate(names):
        fan_in = input_size if name[0] == "i" else hidden_size
        bound = 1.0 / (fan_in ** 0.5)
        w = jax.random.uniform(keys[2 * idx], (hidden_size, fan_in),
                               minval=-bound, maxval=bound, dtype=jnp.float32)
        b = jax.random.uniform(keys[2 * idx + 1], (hidden_size,),
                               minval=-bound, maxval=bound, dtype=jnp.float32)
        params[name] = (w, b)
    return params


def pack_params(params, matmul_dtype=jnp.float32):
    """Pack per-gate params into Wx [In,4H], Wh [H,4H], b_cat [1,4H].

    The matmul-dtype cast happens here (once), not per call.
    """
    wx = jnp.concatenate([params["i" + g][0].T for g in _GATE_ORDER], axis=1)
    wh = jnp.concatenate([params["h" + g][0].T for g in _GATE_ORDER], axis=1)
    b_cat = jnp.concatenate(
        [params["i" + g][1] + params["h" + g][1] for g in _GATE_ORDER])[None, :]
    return wx.astype(matmul_dtype), wh.astype(matmul_dtype), b_cat


# ----------------------------------------------------------------------------
# Pure-JAX references mirroring the PyTorch module verbatim
# ----------------------------------------------------------------------------
def reference_forward(x, h, c, params):
    def lin(name, v):
        w, b = params[name]
        return v @ w.T + b

    i = jax.nn.sigmoid(lin("ii", x) + lin("hi", h))
    f = jax.nn.sigmoid(lin("if", x) + lin("hf", h))
    g = jnp.tanh(lin("ig", x) + lin("hg", h))
    o = jax.nn.sigmoid(lin("io", x) + lin("ho", h))
    new_c = f * c + i * g
    new_h = o * jnp.tanh(new_c)
    return new_h, new_c


def reference_sequence(xs, h0, c0, params):
    def step(carry, x):
        h, c = carry
        nh, nc = reference_forward(x, h, c, params)
        return (nh, nc), (nh, nc)

    _, (hs, cs) = jax.lax.scan(step, (h0, c0), xs)
    return hs, cs


# ----------------------------------------------------------------------------
# Test
# ----------------------------------------------------------------------------
if __name__ == "__main__":
    key = jax.random.PRNGKey(0)
    B, In, H, T = 8, 32, 32, 8                  # 4H = 128 -> lane-dense pre-act

    k_x, k_s, k_p, k_seq = jax.random.split(key, 4)
    x = jax.random.normal(k_x, (B, In), dtype=jnp.float32)
    # state = zeros(2, B, H) in LSTMCell.init(); perturb so the test is non-trivial.
    state = jax.random.normal(k_s, (2, B, H), dtype=jnp.float32)
    h0, c0 = state[0], state[1]
    xs = jax.random.normal(k_seq, (T, B, In), dtype=jnp.float32)

    params = init_params(k_p, In, H)

    # --- single step, f32 matmuls (exact module semantics) ---
    wx32, wh32, b_cat = pack_params(params, jnp.float32)
    ref_h, ref_c = reference_forward(x, h0, c0, params)
    output, (new_h, new_c) = lstm_cell_forward(x, h0, c0, wx32, wh32, b_cat)
    jax.block_until_ready((output, new_h, new_c))
    assert jnp.allclose(new_h, ref_h, atol=1e-4, rtol=1e-4)
    assert jnp.allclose(new_c, ref_c, atol=1e-4, rtol=1e-4)
    assert jnp.allclose(output, new_h)

    # --- single step, bf16 matmul operands / f32 accumulation + gate math ---
    wx16, wh16, _ = pack_params(params, jnp.bfloat16)
    out_bf, (h_bf, c_bf) = lstm_cell_forward(x, h0, c0, wx16, wh16, b_cat)
    jax.block_until_ready((out_bf, h_bf, c_bf))
    assert jnp.allclose(h_bf, ref_h, atol=5e-2, rtol=5e-2)
    assert jnp.allclose(c_bf, ref_c, atol=5e-2, rtol=5e-2)

    # --- sequence: one pallas_call, grid over T, weights VMEM-resident ---
    ref_hs, ref_cs = reference_sequence(xs, h0, c0, params)
    hs, (hT, cT) = lstm_sequence_forward(xs, h0, c0, wx32, wh32, b_cat)
    jax.block_until_ready(hs)
    assert jnp.allclose(hs, ref_hs, atol=1e-4, rtol=1e-4)
    assert jnp.allclose(hT, ref_hs[-1], atol=1e-4, rtol=1e-4)
    assert jnp.allclose(cT, ref_cs[-1], atol=1e-4, rtol=1e-4)

    print("KERNEL_OK")
</pallas_src>

<mosaic_0001>
module attributes {stable_mosaic.version = 11 : i64} {
  func.func @lstm_cell_kernel(%arg0: memref<8x32xf32, #tpu.memory_space<vmem>>, %arg1: memref<8x32xf32, #tpu.memory_space<vmem>>, %arg2: memref<8x32xf32, #tpu.memory_space<vmem>>, %arg3: memref<32x128xf32, #tpu.memory_space<vmem>>, %arg4: memref<32x128xf32, #tpu.memory_space<vmem>>, %arg5: memref<1x128xf32, #tpu.memory_space<vmem>>, %arg6: memref<8x32xf32, #tpu.memory_space<vmem>>, %arg7: memref<8x32xf32, #tpu.memory_space<vmem>>) attributes {dimension_semantics = [], scalar_prefetch = 0 : i64, scratch_operands = 0 : i64, tpu.core_type = #tpu.core_type<tc>} {
    %c0 = arith.constant 0 : index
    %c0_0 = arith.constant 0 : index
    %0 = vector.load %arg0[%c0, %c0_0] : memref<8x32xf32, #tpu.memory_space<vmem>>, vector<8x32xf32>
    %c0_1 = arith.constant 0 : index
    %c0_2 = arith.constant 0 : index
    %1 = vector.load %arg3[%c0_1, %c0_2] : memref<32x128xf32, #tpu.memory_space<vmem>>, vector<32x128xf32>
    %cst = arith.constant dense<0.000000e+00> : vector<8x128xf32>
    %2 = tpu.matmul %0, %1, %cst {dimension_numbers = #tpu.dot_dimension_numbers<[1], [0], [0], [1], [0, 0, 1, 1], [], []>, precision = #tpu.contract_precision<fp32>} : vector<8x32xf32>, vector<32x128xf32>, vector<8x128xf32> -> vector<8x128xf32>
    %c0_3 = arith.constant 0 : index
    %c0_4 = arith.constant 0 : index
    %3 = vector.load %arg1[%c0_3, %c0_4] : memref<8x32xf32, #tpu.memory_space<vmem>>, vector<8x32xf32>
    %c0_5 = arith.constant 0 : index
    %c0_6 = arith.constant 0 : index
    %4 = vector.load %arg4[%c0_5, %c0_6] : memref<32x128xf32, #tpu.memory_space<vmem>>, vector<32x128xf32>
    %cst_7 = arith.constant dense<0.000000e+00> : vector<8x128xf32>
    %5 = tpu.matmul %3, %4, %cst_7 {dimension_numbers = #tpu.dot_dimension_numbers<[1], [0], [0], [1], [0, 0, 1, 1], [], []>, precision = #tpu.contract_precision<fp32>} : vector<8x32xf32>, vector<32x128xf32>, vector<8x128xf32> -> vector<8x128xf32>
    %6 = arith.addf %2, %5 : vector<8x128xf32>
    %c0_8 = arith.constant 0 : index
    %c0_9 = arith.constant 0 : index
    %7 = vector.load %arg5[%c0_8, %c0_9] : memref<1x128xf32, #tpu.memory_space<vmem>>, vector<1x128xf32>
    %8 = vector.broadcast %7 : vector<1x128xf32> to vector<8x128xf32>
    %9 = arith.addf %6, %8 : vector<8x128xf32>
    %10 = vector.extract_strided_slice %9 {offsets = [0, 0], sizes = [8, 32], strides = [1, 1]} : vector<8x128xf32> to vector<8x32xf32>
    %11 = arith.negf %10 : vector<8x32xf32>
    %12 = math.exp %11 : vector<8x32xf32>
    %cst_10 = arith.constant 1.000000e+00 : f32
    %13 = vector.broadcast %cst_10 : f32 to vector<8x32xf32>
    %14 = arith.addf %13, %12 : vector<8x32xf32>
    %15 = arith.divf %13, %14 : vector<8x32xf32>
    %16 = vector.extract_strided_slice %9 {offsets = [0, 32], sizes = [8, 32], strides = [1, 1]} : vector<8x128xf32> to vector<8x32xf32>
    %17 = arith.negf %16 : vector<8x32xf32>
    %18 = math.exp %17 : vector<8x32xf32>
    %cst_11 = arith.constant 1.000000e+00 : f32
    %19 = vector.broadcast %cst_11 : f32 to vector<8x32xf32>
    %20 = arith.addf %19, %18 : vector<8x32xf32>
    %21 = arith.divf %19, %20 : vector<8x32xf32>
    %22 = vector.extract_strided_slice %9 {offsets = [0, 64], sizes = [8, 32], strides = [1, 1]} : vector<8x128xf32> to vector<8x32xf32>
    %23 = math.tanh %22 : vector<8x32xf32>
    %24 = vector.extract_strided_slice %9 {offsets = [0, 96], sizes = [8, 32], strides = [1, 1]} : vector<8x128xf32> to vector<8x32xf32>
    %25 = arith.negf %24 : vector<8x32xf32>
    %26 = math.exp %25 : vector<8x32xf32>
    %cst_12 = arith.constant 1.000000e+00 : f32
    %27 = vector.broadcast %cst_12 : f32 to vector<8x32xf32>
    %28 = arith.addf %27, %26 : vector<8x32xf32>
    %29 = arith.divf %27, %28 : vector<8x32xf32>
    %c0_13 = arith.constant 0 : index
    %c0_14 = arith.constant 0 : index
    %30 = vector.load %arg2[%c0_13, %c0_14] : memref<8x32xf32, #tpu.memory_space<vmem>>, vector<8x32xf32>
    %31 = arith.mulf %21, %30 : vector<8x32xf32>
    %32 = arith.mulf %15, %23 : vector<8x32xf32>
    %33 = arith.addf %31, %32 : vector<8x32xf32>
    %34 = math.tanh %33 : vector<8x32xf32>
    %35 = arith.mulf %29, %34 : vector<8x32xf32>
    %c0_15 = arith.constant 0 : index
    %c0_16 = arith.constant 0 : index
    %36 = vector.load %arg6[%c0_15, %c0_16] : memref<8x32xf32, #tpu.memory_space<vmem>>, vector<8x32xf32>
    tpu.vector_store %arg6[%c0_15, %c0_16], %35 {strides = array<i32>} : memref<8x32xf32, #tpu.memory_space<vmem>>, vector<8x32xf32>,
    %c0_17 = arith.constant 0 : index
    %c0_18 = arith.constant 0 : index
    %37 = vector.load %arg7[%c0_17, %c0_18] : memref<8x32xf32, #tpu.memory_space<vmem>>, vector<8x32xf32>
    tpu.vector_store %arg7[%c0_17, %c0_18], %33 {strides = array<i32>} : memref<8x32xf32, #tpu.memory_space<vmem>>, vector<8x32xf32>,
    return
  }
}

</mosaic_0001>

<llo_original>
// kernel: tpu_custom_call.1
$region0: #{tpu_custom_call.1}
  #allocation0 [shape = 'u32[]', space=smem, size = 0x4, offset = 0x4, fixed_abs, tag = 'smem constant byte address 0x4 - core index']
  #allocation1 [shape = 'u32[144,128]{1,0:T(1,128)}', space=vmem, size = 0x12000, scoped, tag = 'internal scratch']
  %s0 = inlined_call_operand.hbm [shape: f32[8,32], index: 0, kind: input, shape index: {}]
  %s1 = inlined_call_operand.hbm [shape: f32[8,32], index: 1, kind: input, shape index: {}]
  %s2 = inlined_call_operand.hbm [shape: f32[8,32], index: 2, kind: input, shape index: {}]
  %s3 = inlined_call_operand.hbm [shape: f32[32,128], index: 3, kind: input, shape index: {}]
  %s4 = inlined_call_operand.hbm [shape: f32[32,128], index: 4, kind: input, shape index: {}]
  %s5 = inlined_call_operand.vmem [shape: f32[1,128], index: 5, kind: input, shape index: {}]
  %s6 = inlined_call_operand.hbm [shape: f32[8,32], index: 6, kind: output, shape index: {0}]
  %s7 = inlined_call_operand.hbm [shape: f32[8,32], index: 7, kind: output, shape index: {1}]
  %8 = xla_tuple %s6, %s7
  %s9 = sld [smem:[#allocation0]]
  $region62: #{tpu_custom_call.1} parent=0
    _
  %s11 = ssub.s32 1, %s9
  %s12 = scalar_select 0, %s11, %s9
  $region1: #{tpu_custom_call.1} parent=0
    #allocation2 [shape = 'u8[4096]{0}', space=vmem, size = 0x1000, scoped, tag = 'input window, operand 0, single buffered']
    #allocation3 [shape = 's32[1]{0}', space=sflag, size = 0x4, scoped, tag = 'scoped memory for tpu_custom_call.1']
    #allocation4 [shape = 's32[1]{0}', space=sflag, size = 0x4, scoped, tag = 'scoped memory for tpu_custom_call.1']
    #allocation5 [shape = 'u8[4096]{0}', space=vmem, size = 0x1000, scoped, tag = 'input window, operand 1, single buffered']
    #allocation6 [shape = 's32[1]{0}', space=sflag, size = 0x4, scoped, tag = 'scoped memory for tpu_custom_call.1']
    #allocation7 [shape = 'u8[4096]{0}', space=vmem, size = 0x1000, scoped, tag = 'input window, operand 2, single buffered']
    #allocation8 [shape = 'u8[16384]{0}', space=vmem, size = 0x4000, scoped, tag = 'input window, operand 3, single buffered']
    #allocation9 [shape = 's32[1]{0}', space=sflag, size = 0x4, scoped, tag = 'scoped memory for tpu_custom_call.1']
    #allocation10 [shape = 'u8[16384]{0}', space=vmem, size = 0x4000, scoped, tag = 'input window, operand 4, single buffered']
    #allocation11 [shape = 'u8[4096]{0}', space=vmem, size = 0x1000, scoped, tag = 'output window, operand 0, single buffered']
    #allocation12 [shape = 'u8[4096]{0}', space=vmem, size = 0x1000, scoped, tag = 'output window, operand 1, single buffered']
    #allocation13 [shape = 's32[1]{0}', space=sflag, size = 0x4, scoped, tag = 'scoped memory for tpu_custom_call.1']
    %13 = vsyncpa [#allocation3], 0
    %14 = vsyncpa [#allocation6], 0
    %15 = vsyncpa [#allocation9], 0
    %16 = vsyncpa [#allocation4], 0
    %17 = vsyncpa [#allocation13], 0
    // Predicated region
    $region2: #{tpu_custom_call.1} parent=1 // pred_check
      _
    $region3: #{tpu_custom_call.1} parent=1 // pred_check_branch
      %19 = sbr.rel (0) target = $region5
    $region4: #{tpu_custom_call.1} parent=1 // pred_region
      %s21 = ssub.s32 128, 128
      %22 = vsyncadd [#allocation3], %s21
      %s24 = sshll.u32 [#allocation2], 4
      %s25 = int_to_ptr.vmem [resolvable:$true] %s24
      %27 = dma.hbm_to_vmem [thread:$0]  %s0, 128, %s25, [#allocation3]
    $region5: #{tpu_custom_call.1} parent=1 // pred_fallthru
      _
    // Predicated region
    $region6: #{tpu_custom_call.1} parent=1 // pred_check
      _
    $region7: #{tpu_custom_call.1} parent=1 // pred_check_branch
      %29 = sbr.rel (0) target = $region9
    $region8: #{tpu_custom_call.1} parent=1 // pred_region
      %s31 = ssub.s32 128, 128
      %32 = vsyncadd [#allocation6], %s31
      %s34 = sshll.u32 [#allocation5], 4
      %s35 = int_to_ptr.vmem [resolvable:$true] %s34
      %37 = dma.hbm_to_vmem [thread:$0]  %s1, 128, %s35, [#allocation6]
    $region9: #{tpu_custom_call.1} parent=1 // pred_fallthru
      _
    // Predicated region
    $region10: #{tpu_custom_call.1} parent=1 // pred_check
      _
    $region11: #{tpu_custom_call.1} parent=1 // pred_check_branch
      %39 = sbr.rel (0) target = $region13
    $region12: #{tpu_custom_call.1} parent=1 // pred_region
      %s41 = ssub.s32 128, 128
      %42 = vsyncadd [#allocation6], %s41
      %s44 = sshll.u32 [#allocation7], 4
      %s45 = int_to_ptr.vmem [resolvable:$true] %s44
      %47 = dma.hbm_to_vmem [thread:$0]  %s2, 128, %s45, [#allocation6]
    $region13: #{tpu_custom_call.1} parent=1 // pred_fallthru
      _
    // Predicated region
    $region14: #{tpu_custom_call.1} parent=1 // pred_check
      _
    $region15: #{tpu_custom_call.1} parent=1 // pred_check_branch
      %49 = sbr.rel (0) target = $region17
    $region16: #{tpu_custom_call.1} parent=1 // pred_region
      %s51 = ssub.s32 512, 512
      %52 = vsyncadd [#allocation9], %s51
      %s53 = sshll.u32 [#allocation8], 4
      %s54 = int_to_ptr.vmem [resolvable:$true] %s53
      %59 = dma.hbm_to_vmem [thread:$0]  %s3, 512, %s54, [#allocation9], 128, 128, 8
    $region17: #{tpu_custom_call.1} parent=1 // pred_fallthru
      _
    // Predicated region
    $region18: #{tpu_custom_call.1} parent=1 // pred_check
      _
    $region19: #{tpu_custom_call.1} parent=1 // pred_check_branch
      %61 = sbr.rel (0) target = $region21
    $region20: #{tpu_custom_call.1} parent=1 // pred_region
      %s63 = ssub.s32 512, 512
      %64 = vsyncadd [#allocation9], %s63
      %s65 = sshll.u32 [#allocation10], 4
      %s66 = int_to_ptr.vmem [resolvable:$true] %s65
      %71 = dma.hbm_to_vmem [thread:$0]  %s4, 512, %s66, [#allocation9], 128, 128, 8
    $region21: #{tpu_custom_call.1} parent=1 // pred_fallthru
      _
    // Predicated region
    $region22: #{tpu_custom_call.1} parent=1 // pred_check
      _
    $region23: #{tpu_custom_call.1} parent=1 // pred_check_branch
      %73 = sbr.rel (0) target = $region25
    $region24: #{tpu_custom_call.1} parent=1 // pred_region
      _
    $region25: #{tpu_custom_call.1} parent=1 // pred_fallthru
      _
    // Predicated region
    $region26: #{tpu_custom_call.1} parent=1 // pred_check
      _
    $region27: #{tpu_custom_call.1} parent=1 // pred_check_branch
      %75 = sbr.rel (0) target = $region29
    $region28: #{tpu_custom_call.1} parent=1 // pred_region
      %76 = dma.done [#allocation3], 128
    $region29: #{tpu_custom_call.1} parent=1 // pred_fallthru
      _
    // Predicated region
    $region30: #{tpu_custom_call.1} parent=1 // pred_check
      _
    $region31: #{tpu_custom_call.1} parent=1 // pred_check_branch
      %78 = sbr.rel (0) target = $region33
    $region32: #{tpu_custom_call.1} parent=1 // pred_region
      %79 = dma.done [#allocation6], 128
    $region33: #{tpu_custom_call.1} parent=1 // pred_fallthru
      _
    // Predicated region
    $region34: #{tpu_custom_call.1} parent=1 // pred_check
      _
    $region35: #{tpu_custom_call.1} parent=1 // pred_check_branch
      %81 = sbr.rel (0) target = $region37
    $region36: #{tpu_custom_call.1} parent=1 // pred_region
      %82 = dma.done [#allocation6], 128
    $region37: #{tpu_custom_call.1} parent=1 // pred_fallthru
      _
    // Predicated region
    $region38: #{tpu_custom_call.1} parent=1 // pred_check
      _
    $region39: #{tpu_custom_call.1} parent=1 // pred_check_branch
      %84 = sbr.rel (0) target = $region41
    $region40: #{tpu_custom_call.1} parent=1 // pred_region
      %85 = dma.done [#allocation9], 512
    $region41: #{tpu_custom_call.1} parent=1 // pred_fallthru
      _
    // Predicated region
    $region42: #{tpu_custom_call.1} parent=1 // pred_check
      _
    $region43: #{tpu_custom_call.1} parent=1 // pred_check_branch
      %87 = sbr.rel (0) target = $region45
    $region44: #{tpu_custom_call.1} parent=1 // pred_region
      %88 = dma.done [#allocation9], 512
    $region45: #{tpu_custom_call.1} parent=1 // pred_fallthru
      _
    %v89 = vld [vmem:[#allocation2] sm:$0xff]
    %v90 = vld [vmem:[#allocation8] sm:$0xff]
    %v91 = vld [vmem:[#allocation8 + $0x8] sm:$0xff]
    %v92 = vld [vmem:[#allocation8 + $0x10] sm:$0xff]
    %v93 = vld [vmem:[#allocation8 + $0x18] sm:$0xff]
    %v94 = vld [vmem:[#allocation5] sm:$0xff]
    %v95 = vld [vmem:[#allocation10] sm:$0xff]
    %v96 = vld [vmem:[#allocation10 + $0x8] sm:$0xff]
    %v97 = vld [vmem:[#allocation10 + $0x10] sm:$0xff]
    %v98 = vld [vmem:[#allocation10 + $0x18] sm:$0xff]
    %vm99 = vcmask 261120
    %v101 = vsel %vm99, %v94, 0
    %103 = vmatprep.subr.mxu0 0.0
    %104 = vmatpush1.msra.mxu0 0.0
    %105 = vmatprep.subr.mxu0 0.0
    %106 = vmatpush1.msra.mxu0 0.0
    %107 = vmatprep.subr.mxu0 0.0
    %108 = vmatpush1.msra.mxu0 0.0
    %109 = vmatprep.subr.mxu0 0.0
    %110 = vmatpush1.msra.mxu0 0.0
    %111 = vmatprep.subr.mxu0 0.0
    %112 = vmatpush1.msra.mxu0 0.0
    %113 = vmatprep.subr.mxu0 0.0
    %114 = vmatpush1.msra.mxu0 0.0
    %115 = vmatprep.subr.mxu0 0.0
    %116 = vmatpush1.msra.mxu0 0.0
    %117 = vmatprep.subr.mxu0 0.0
    %118 = vmatpush1.msra.mxu0 0.0
    %119 = vmatprep.subr.mxu0 0.0
    %120 = vmatpush1.msra.mxu0 0.0
    %121 = vmatprep.subr.mxu0 0.0
    %122 = vmatpush1.msra.mxu0 0.0
    %123 = vmatprep.subr.mxu0 0.0
    %124 = vmatpush1.msra.mxu0 0.0
    %125 = vmatprep.subr.mxu0 0.0
    %126 = vmatpush1.msra.mxu0 0.0
    %127 = vmatprep.subr.mxu0 0.0
    %v128 = vand.u32 %v98, 4294901760
    %129 = vmatpush1.msra.mxu0 %v128
    %130 = vmatprep.subr.mxu0 0.0
    %v131 = vand.u32 %v97, 4294901760
    %132 = vmatpush1.msra.mxu0 %v131
    %133 = vmatprep.subr.mxu0 0.0
    %v134 = vand.u32 %v96, 4294901760
    %135 = vmatpush1.msra.mxu0 %v134
    %136 = vmatprep.subr.mxu0 0.0
    %v137 = vand.u32 %v95, 4294901760
    %138 = vmatpush1.msra.mxu0 %v137
    %139 = vmatprep.subr.mxu0 0.0
    %140 = vmatpush2.msra.mxu0 0.0
    %141 = vmatprep.subr.mxu0 0.0
    %142 = vmatpush2.msra.mxu0 0.0
    %143 = vmatprep.subr.mxu0 0.0
    %144 = vmatpush2.msra.mxu0 0.0
    %145 = vmatprep.subr.mxu0 0.0
    %146 = vmatpush2.msra.mxu0 0.0
    %147 = vmatprep.subr.mxu0 0.0
    %148 = vmatpush2.msra.mxu0 0.0
    %149 = vmatprep.subr.mxu0 0.0
    %150 = vmatpush2.msra.mxu0 0.0
    %151 = vmatprep.subr.mxu0 0.0
    %152 = vmatpush2.msra.mxu0 0.0
    %153 = vmatprep.subr.mxu0 0.0
    %154 = vmatpush2.msra.mxu0 0.0
    %155 = vmatprep.subr.mxu0 0.0
    %156 = vmatpush2.msra.mxu0 0.0
    %157 = vmatprep.subr.mxu0 0.0
    %158 = vmatpush2.msra.mxu0 0.0
    %159 = vmatprep.subr.mxu0 0.0
    %160 = vmatpush2.msra.mxu0 0.0
    %161 = vmatprep.subr.mxu0 0.0
    %162 = vmatpush2.msra.mxu0 0.0
    %163 = vmatprep.subr.mxu0 0.0
    %164 = vmatpush2.msra.mxu0 0.0
    %165 = vmatprep.subr.mxu0 0.0
    %166 = vmatpush2.msra.mxu0 0.0
    %167 = vmatprep.subr.mxu0 0.0
    %168 = vmatpush2.msra.mxu0 0.0
    %169 = vmatprep.subr.mxu0 0.0
    %170 = vmatpush2.msra.mxu0 0.0
    %171 = vmatprep.mubr.f32.mxu0 0.0
    %v172 = vand.u32 %v101, 4294901760
    %v173 = vsub.f32 %v101, %v172
    %v174 = vand.u32 %v173, 4294901760
    %v175 = vsub.f32 %v173, %v174
    %v176 = vand.u32 %v175, 4294901760
    %177 = vmatmul.mubr.f32.gmra.mxu0 %v176
    %v178 = vpop.f32.mrf.mxu0
    %v179 = vadd.f32 0.0, %v178
    %v180 = vpop.f32.mrf.mxu0
    %181 = vdwg.mxu0
    %182 = vmatprep.subr.mxu0 0.0
    %183 = vmatpush1.msra.mxu0 0.0
    %184 = vmatprep.subr.mxu0 0.0
    %185 = vmatpush1.msra.mxu0 0.0
    %186 = vmatprep.subr.mxu0 0.0
    %187 = vmatpush1.msra.mxu0 0.0
    %188 = vmatprep.subr.mxu0 0.0
    %189 = vmatpush1.msra.mxu0 0.0
    %190 = vmatprep.subr.mxu0 0.0
    %191 = vmatpush1.msra.mxu0 0.0
    %192 = vmatprep.subr.mxu0 0.0
    %193 = vmatpush1.msra.mxu0 0.0
    %194 = vmatprep.subr.mxu0 0.0
    %195 = vmatpush1.msra.mxu0 0.0
    %196 = vmatprep.subr.mxu0 0.0
    %197 = vmatpush1.msra.mxu0 0.0
    %198 = vmatprep.subr.mxu0 0.0
    %199 = vmatpush1.msra.mxu0 0.0
    %200 = vmatprep.subr.mxu0 0.0
    %201 = vmatpush1.msra.mxu0 0.0
    %202 = vmatprep.subr.mxu0 0.0
    %203 = vmatpush1.msra.mxu0 0.0
    %204 = vmatprep.subr.mxu0 0.0
    %205 = vmatpush1.msra.mxu0 0.0
    %206 = vmatprep.subr.mxu0 0.0
    %v207 = vand.u32 %v98, 4294901760
    %v208 = vsub.f32 %v98, %v207
    %v209 = vand.u32 %v208, 4294901760
    %v210 = vsub.f32 %v208, %v209
    %v211 = vand.u32 %v210, 4294901760
    %212 = vmatpush1.msra.mxu0 %v211
    %213 = vmatprep.subr.mxu0 0.0
    %v214 = vand.u32 %v97, 4294901760
    %v215 = vsub.f32 %v97, %v214
    %v216 = vand.u32 %v215, 4294901760
    %v217 = vsub.f32 %v215, %v216
    %v218 = vand.u32 %v217, 4294901760
    %219 = vmatpush1.msra.mxu0 %v218
    %220 = vmatprep.subr.mxu0 0.0
    %v221 = vand.u32 %v96, 4294901760
    %v222 = vsub.f32 %v96, %v221
    %v223 = vand.u32 %v222, 4294901760
    %v224 = vsub.f32 %v222, %v223
    %v225 = vand.u32 %v224, 4294901760
    %226 = vmatpush1.msra.mxu0 %v225
    %227 = vmatprep.subr.mxu0 0.0
    %v228 = vand.u32 %v95, 4294901760
    %v229 = vsub.f32 %v95, %v228
    %v230 = vand.u32 %v229, 4294901760
    %v231 = vsub.f32 %v229, %v230
    %v232 = vand.u32 %v231, 4294901760
    %233 = vmatpush1.msra.mxu0 %v232
    %234 = vmatprep.subr.mxu0 0.0
    %235 = vmatpush2.msra.mxu0 0.0
    %236 = vmatprep.subr.mxu0 0.0
    %237 = vmatpush2.msra.mxu0 0.0
    %238 = vmatprep.subr.mxu0 0.0
    %239 = vmatpush2.msra.mxu0 0.0
    %240 = vmatprep.subr.mxu0 0.0
    %241 = vmatpush2.msra.mxu0 0.0
    %242 = vmatprep.subr.mxu0 0.0
    %243 = vmatpush2.msra.mxu0 0.0
    %244 = vmatprep.subr.mxu0 0.0
    %245 = vmatpush2.msra.mxu0 0.0
    %246 = vmatprep.subr.mxu0 0.0
    %247 = vmatpush2.msra.mxu0 0.0
    %248 = vmatprep.subr.mxu0 0.0
    %249 = vmatpush2.msra.mxu0 0.0
    %250 = vmatprep.subr.mxu0 0.0
    %251 = vmatpush2.msra.mxu0 0.0
    %252 = vmatprep.subr.mxu0 0.0
    %253 = vmatpush2.msra.mxu0 0.0
    %254 = vmatprep.subr.mxu0 0.0
    %255 = vmatpush2.msra.mxu0 0.0
    %256 = vmatprep.subr.mxu0 0.0
    %257 = vmatpush2.msra.mxu0 0.0
    %258 = vmatprep.subr.mxu0 0.0
    %259 = vmatpush2.msra.mxu0 0.0
    %260 = vmatprep.subr.mxu0 0.0
    %261 = vmatpush2.msra.mxu0 0.0
    %262 = vmatprep.subr.mxu0 0.0
    %263 = vmatpush2.msra.mxu0 0.0
    %264 = vmatprep.subr.mxu0 0.0
    %265 = vmatpush2.msra.mxu0 0.0
    %266 = vmatprep.mubr.f32.mxu0 0.0
    %v267 = vand.u32 %v101, 4294901760
    %268 = vmatmul.mubr.f32.gmra.mxu0 %v267
    %v269 = vpop.f32.mrf.mxu0
    %v270 = vadd.f32 %v179, %v269
    %v271 = vpop.f32.mrf.mxu0
    %272 = vdwg.mxu0
    %273 = vmatprep.subr.mxu0 0.0
    %274 = vmatpush1.msra.mxu0 0.0
    %275 = vmatprep.subr.mxu0 0.0
    %276 = vmatpush1.msra.mxu0 0.0
    %277 = vmatprep.subr.mxu0 0.0
    %278 = vmatpush1.msra.mxu0 0.0
    %279 = vmatprep.subr.mxu0 0.0
    %280 = vmatpush1.msra.mxu0 0.0
    %281 = vmatprep.subr.mxu0 0.0
    %282 = vmatpush1.msra.mxu0 0.0
    %283 = vmatprep.subr.mxu0 0.0
    %284 = vmatpush1.msra.mxu0 0.0
    %285 = vmatprep.subr.mxu0 0.0
    %286 = vmatpush1.msra.mxu0 0.0
    %287 = vmatprep.subr.mxu0 0.0
    %288 = vmatpush1.msra.mxu0 0.0
    %289 = vmatprep.subr.mxu0 0.0
    %290 = vmatpush1.msra.mxu0 0.0
    %291 = vmatprep.subr.mxu0 0.0
    %292 = vmatpush1.msra.mxu0 0.0
    %293 = vmatprep.subr.mxu0 0.0
    %294 = vmatpush1.msra.mxu0 0.0
    %295 = vmatprep.subr.mxu0 0.0
    %296 = vmatpush1.msra.mxu0 0.0
    %297 = vmatprep.subr.mxu0 0.0
    %v298 = vand.u32 %v98, 4294901760
    %v299 = vsub.f32 %v98, %v298
    %300 = vmatpush1.msra.mxu0 %v299
    %301 = vmatprep.subr.mxu0 0.0
    %v302 = vand.u32 %v97, 4294901760
    %v303 = vsub.f32 %v97, %v302
    %304 = vmatpush1.msra.mxu0 %v303
    %305 = vmatprep.subr.mxu0 0.0
    %v306 = vand.u32 %v96, 4294901760
    %v307 = vsub.f32 %v96, %v306
    %308 = vmatpush1.msra.mxu0 %v307
    %309 = vmatprep.subr.mxu0 0.0
    %v310 = vand.u32 %v95, 4294901760
    %v311 = vsub.f32 %v95, %v310
    %312 = vmatpush1.msra.mxu0 %v311
    %313 = vmatprep.subr.mxu0 0.0
    %314 = vmatpush2.msra.mxu0 0.0
    %315 = vmatprep.subr.mxu0 0.0
    %316 = vmatpush2.msra.mxu0 0.0
    %317 = vmatprep.subr.mxu0 0.0
    %318 = vmatpush2.msra.mxu0 0.0
    %319 = vmatprep.subr.mxu0 0.0
    %320 = vmatpush2.msra.mxu0 0.0
    %321 = vmatprep.subr.mxu0 0.0
    %322 = vmatpush2.msra.mxu0 0.0
    %323 = vmatprep.subr.mxu0 0.0
    %324 = vmatpush2.msra.mxu0 0.0
    %325 = vmatprep.subr.mxu0 0.0
    %326 = vmatpush2.msra.mxu0 0.0
    %327 = vmatprep.subr.mxu0 0.0
    %328 = vmatpush2.msra.mxu0 0.0
    %329 = vmatprep.subr.mxu0 0.0
    %330 = vmatpush2.msra.mxu0 0.0
    %331 = vmatprep.subr.mxu0 0.0
    %332 = vmatpush2.msra.mxu0 0.0
    %333 = vmatprep.subr.mxu0 0.0
    %334 = vmatpush2.msra.mxu0 0.0
    %335 = vmatprep.subr.mxu0 0.0
    %336 = vmatpush2.msra.mxu0 0.0
    %337 = vmatprep.subr.mxu0 0.0
    %338 = vmatpush2.msra.mxu0 0.0
    %339 = vmatprep.subr.mxu0 0.0
    %340 = vmatpush2.msra.mxu0 0.0
    %341 = vmatprep.subr.mxu0 0.0
    %342 = vmatpush2.msra.mxu0 0.0
    %343 = vmatprep.subr.mxu0 0.0
    %344 = vmatpush2.msra.mxu0 0.0
    %345 = vmatprep.mubr.f32.mxu0 0.0
    %v346 = vand.u32 %v101, 4294901760
    %v347 = vsub.f32 %v101, %v346
    %348 = vmatmul.mubr.f32.gmra.mxu0 %v347
    %v349 = vpop.f32.mrf.mxu0
    %v350 = vadd.f32 %v270, %v349
    %v351 = vpop.f32.mrf.mxu0
    %352 = vdwg.mxu0
    %353 = vmatprep.subr.mxu0 0.0
    %354 = vmatpush1.msra.mxu0 0.0
    %355 = vmatprep.subr.mxu0 0.0
    %356 = vmatpush1.msra.mxu0 0.0
    %357 = vmatprep.subr.mxu0 0.0
    %358 = vmatpush1.msra.mxu0 0.0
    %359 = vmatprep.subr.mxu0 0.0
    %360 = vmatpush1.msra.mxu0 0.0
    %361 = vmatprep.subr.mxu0 0.0
    %362 = vmatpush1.msra.mxu0 0.0
    %363 = vmatprep.subr.mxu0 0.0
    %364 = vmatpush1.msra.mxu0 0.0
    %365 = vmatprep.subr.mxu0 0.0
    %366 = vmatpush1.msra.mxu0 0.0
    %367 = vmatprep.subr.mxu0 0.0
    %368 = vmatpush1.msra.mxu0 0.0
    %369 = vmatprep.subr.mxu0 0.0
    %370 = vmatpush1.msra.mxu0 0.0
    %371 = vmatprep.subr.mxu0 0.0
    %372 = vmatpush1.msra.mxu0 0.0
    %373 = vmatprep.subr.mxu0 0.0
    %374 = vmatpush1.msra.mxu0 0.0
    %375 = vmatprep.subr.mxu0 0.0
    %376 = vmatpush1.msra.mxu0 0.0
    %377 = vmatprep.subr.mxu0 0.0
    %v378 = vand.u32 %v98, 4294901760
    %379 = vmatpush1.msra.mxu0 %v378
    %380 = vmatprep.subr.mxu0 0.0
    %v381 = vand.u32 %v97, 4294901760
    %382 = vmatpush1.msra.mxu0 %v381
    %383 = vmatprep.subr.mxu0 0.0
    %v384 = vand.u32 %v96, 4294901760
    %385 = vmatpush1.msra.mxu0 %v384
    %386 = vmatprep.subr.mxu0 0.0
    %v387 = vand.u32 %v95, 4294901760
    %388 = vmatpush1.msra.mxu0 %v387
    %389 = vmatprep.subr.mxu0 0.0
    %390 = vmatpush2.msra.mxu0 0.0
    %391 = vmatprep.subr.mxu0 0.0
    %392 = vmatpush2.msra.mxu0 0.0
    %393 = vmatprep.subr.mxu0 0.0
    %394 = vmatpush2.msra.mxu0 0.0
    %395 = vmatprep.subr.mxu0 0.0
    %396 = vmatpush2.msra.mxu0 0.0
    %397 = vmatprep.subr.mxu0 0.0
    %398 = vmatpush2.msra.mxu0 0.0
    %399 = vmatprep.subr.mxu0 0.0
    %400 = vmatpush2.msra.mxu0 0.0
    %401 = vmatprep.subr.mxu0 0.0
    %402 = vmatpush2.msra.mxu0 0.0
    %403 = vmatprep.subr.mxu0 0.0
    %404 = vmatpush2.msra.mxu0 0.0
    %405 = vmatprep.subr.mxu0 0.0
    %406 = vmatpush2.msra.mxu0 0.0
    %407 = vmatprep.subr.mxu0 0.0
    %408 = vmatpush2.msra.mxu0 0.0
    %409 = vmatprep.subr.mxu0 0.0
    %410 = vmatpush2.msra.mxu0 0.0
    %411 = vmatprep.subr.mxu0 0.0
    %412 = vmatpush2.msra.mxu0 0.0
    %413 = vmatprep.subr.mxu0 0.0
    %414 = vmatpush2.msra.mxu0 0.0
    %415 = vmatprep.subr.mxu0 0.0
    %416 = vmatpush2.msra.mxu0 0.0
    %417 = vmatprep.subr.mxu0 0.0
    %418 = vmatpush2.msra.mxu0 0.0
    %419 = vmatprep.subr.mxu0 0.0
    %420 = vmatpush2.msra.mxu0 0.0
    %421 = vmatprep.mubr.f32.mxu0 0.0
    %v422 = vand.u32 %v101, 4294901760
    %v423 = vsub.f32 %v101, %v422
    %v424 = vand.u32 %v423, 4294901760
    %425 = vmatmul.mubr.f32.gmra.mxu0 %v424
    %v426 = vpop.f32.mrf.mxu0
    %v427 = vadd.f32 %v350, %v426
    %v428 = vpop.f32.mrf.mxu0
    %429 = vdwg.mxu0
    %430 = vmatprep.subr.mxu0 0.0
    %431 = vmatpush1.msra.mxu0 0.0
    %432 = vmatprep.subr.mxu0 0.0
    %433 = vmatpush1.msra.mxu0 0.0
    %434 = vmatprep.subr.mxu0 0.0
    %435 = vmatpush1.msra.mxu0 0.0
    %436 = vmatprep.subr.mxu0 0.0
    %437 = vmatpush1.msra.mxu0 0.0
    %438 = vmatprep.subr.mxu0 0.0
    %439 = vmatpush1.msra.mxu0 0.0
    %440 = vmatprep.subr.mxu0 0.0
    %441 = vmatpush1.msra.mxu0 0.0
    %442 = vmatprep.subr.mxu0 0.0
    %443 = vmatpush1.msra.mxu0 0.0
    %444 = vmatprep.subr.mxu0 0.0
    %445 = vmatpush1.msra.mxu0 0.0
    %446 = vmatprep.subr.mxu0 0.0
    %447 = vmatpush1.msra.mxu0 0.0
    %448 = vmatprep.subr.mxu0 0.0
    %449 = vmatpush1.msra.mxu0 0.0
    %450 = vmatprep.subr.mxu0 0.0
    %451 = vmatpush1.msra.mxu0 0.0
    %452 = vmatprep.subr.mxu0 0.0
    %453 = vmatpush1.msra.mxu0 0.0
    %454 = vmatprep.subr.mxu0 0.0
    %v455 = vand.u32 %v98, 4294901760
    %v456 = vsub.f32 %v98, %v455
    %v457 = vand.u32 %v456, 4294901760
    %458 = vmatpush1.msra.mxu0 %v457
    %459 = vmatprep.subr.mxu0 0.0
    %v460 = vand.u32 %v97, 4294901760
    %v461 = vsub.f32 %v97, %v460
    %v462 = vand.u32 %v461, 4294901760
    %463 = vmatpush1.msra.mxu0 %v462
    %464 = vmatprep.subr.mxu0 0.0
    %v465 = vand.u32 %v96, 4294901760
    %v466 = vsub.f32 %v96, %v465
    %v467 = vand.u32 %v466, 4294901760
    %468 = vmatpush1.msra.mxu0 %v467
    %469 = vmatprep.subr.mxu0 0.0
    %v470 = vand.u32 %v95, 4294901760
    %v471 = vsub.f32 %v95, %v470
    %v472 = vand.u32 %v471, 4294901760
    %473 = vmatpush1.msra.mxu0 %v472
    %474 = vmatprep.subr.mxu0 0.0
    %475 = vmatpush2.msra.mxu0 0.0
    %476 = vmatprep.subr.mxu0 0.0
    %477 = vmatpush2.msra.mxu0 0.0
    %478 = vmatprep.subr.mxu0 0.0
    %479 = vmatpush2.msra.mxu0 0.0
    %480 = vmatprep.subr.mxu0 0.0
    %481 = vmatpush2.msra.mxu0 0.0
    %482 = vmatprep.subr.mxu0 0.0
    %483 = vmatpush2.msra.mxu0 0.0
    %484 = vmatprep.subr.mxu0 0.0
    %485 = vmatpush2.msra.mxu0 0.0
    %486 = vmatprep.subr.mxu0 0.0
    %487 = vmatpush2.msra.mxu0 0.0
    %488 = vmatprep.subr.mxu0 0.0
    %489 = vmatpush2.msra.mxu0 0.0
    %490 = vmatprep.subr.mxu0 0.0
    %491 = vmatpush2.msra.mxu0 0.0
    %492 = vmatprep.subr.mxu0 0.0
    %493 = vmatpush2.msra.mxu0 0.0
    %494 = vmatprep.subr.mxu0 0.0
    %495 = vmatpush2.msra.mxu0 0.0
    %496 = vmatprep.subr.mxu0 0.0
    %497 = vmatpush2.msra.mxu0 0.0
    %498 = vmatprep.subr.mxu0 0.0
    %499 = vmatpush2.msra.mxu0 0.0
    %500 = vmatprep.subr.mxu0 0.0
    %501 = vmatpush2.msra.mxu0 0.0
    %502 = vmatprep.subr.mxu0 0.0
    %503 = vmatpush2.msra.mxu0 0.0
    %504 = vmatprep.subr.mxu0 0.0
    %505 = vmatpush2.msra.mxu0 0.0
    %506 = vmatprep.mubr.f32.mxu0 0.0
    %v507 = vand.u32 %v101, 4294901760
    %508 = vmatmul.mubr.f32.gmra.mxu0 %v507
    %v509 = vpop.f32.mrf.mxu0
    %v510 = vadd.f32 %v427, %v509
    %v511 = vpop.f32.mrf.mxu0
    %512 = vdwg.mxu0
    %513 = vmatprep.subr.mxu0 0.0
    %514 = vmatpush1.msra.mxu0 0.0
    %515 = vmatprep.subr.mxu0 0.0
    %516 = vmatpush1.msra.mxu0 0.0
    %517 = vmatprep.subr.mxu0 0.0
    %518 = vmatpush1.msra.mxu0 0.0
    %519 = vmatprep.subr.mxu0 0.0
    %520 = vmatpush1.msra.mxu0 0.0
    %521 = vmatprep.subr.mxu0 0.0
    %522 = vmatpush1.msra.mxu0 0.0
    %523 = vmatprep.subr.mxu0 0.0
    %524 = vmatpush1.msra.mxu0 0.0
    %525 = vmatprep.subr.mxu0 0.0
    %526 = vmatpush1.msra.mxu0 0.0
    %527 = vmatprep.subr.mxu0 0.0
    %528 = vmatpush1.msra.mxu0 0.0
    %529 = vmatprep.subr.mxu0 0.0
    %530 = vmatpush1.msra.mxu0 0.0
    %531 = vmatprep.subr.mxu0 0.0
    %532 = vmatpush1.msra.mxu0 0.0
    %533 = vmatprep.subr.mxu0 0.0
    %534 = vmatpush1.msra.mxu0 0.0
    %535 = vmatprep.subr.mxu0 0.0
    %536 = vmatpush1.msra.mxu0 0.0
    %537 = vmatprep.subr.mxu0 0.0
    %v538 = vand.u32 %v98, 4294901760
    %539 = vmatpush1.msra.mxu0 %v538
    %540 = vmatprep.subr.mxu0 0.0
    %v541 = vand.u32 %v97, 4294901760
    %542 = vmatpush1.msra.mxu0 %v541
    %543 = vmatprep.subr.mxu0 0.0
    %v544 = vand.u32 %v96, 4294901760
    %545 = vmatpush1.msra.mxu0 %v544
    %546 = vmatprep.subr.mxu0 0.0
    %v547 = vand.u32 %v95, 4294901760
    %548 = vmatpush1.msra.mxu0 %v547
    %549 = vmatprep.subr.mxu0 0.0
    %550 = vmatpush2.msra.mxu0 0.0
    %551 = vmatprep.subr.mxu0 0.0
    %552 = vmatpush2.msra.mxu0 0.0
    %553 = vmatprep.subr.mxu0 0.0
    %554 = vmatpush2.msra.mxu0 0.0
    %555 = vmatprep.subr.mxu0 0.0
    %556 = vmatpush2.msra.mxu0 0.0
    %557 = vmatprep.subr.mxu0 0.0
    %558 = vmatpush2.msra.mxu0 0.0
    %559 = vmatprep.subr.mxu0 0.0
    %560 = vmatpush2.msra.mxu0 0.0
    %561 = vmatprep.subr.mxu0 0.0
    %562 = vmatpush2.msra.mxu0 0.0
    %563 = vmatprep.subr.mxu0 0.0
    %564 = vmatpush2.msra.mxu0 0.0
    %565 = vmatprep.subr.mxu0 0.0
    %566 = vmatpush2.msra.mxu0 0.0
    %567 = vmatprep.subr.mxu0 0.0
    %568 = vmatpush2.msra.mxu0 0.0
    %569 = vmatprep.subr.mxu0 0.0
    %570 = vmatpush2.msra.mxu0 0.0
    %571 = vmatprep.subr.mxu0 0.0
    %572 = vmatpush2.msra.mxu0 0.0
    %573 = vmatprep.subr.mxu0 0.0
    %574 = vmatpush2.msra.mxu0 0.0
    %575 = vmatprep.subr.mxu0 0.0
    %576 = vmatpush2.msra.mxu0 0.0
    %577 = vmatprep.subr.mxu0 0.0
    %578 = vmatpush2.msra.mxu0 0.0
    %579 = vmatprep.subr.mxu0 0.0
    %580 = vmatpush2.msra.mxu0 0.0
    %581 = vmatprep.mubr.f32.mxu0 0.0
    %v582 = vand.u32 %v101, 4294901760
    %583 = vmatmul.mubr.f32.gmra.mxu0 %v582
    %v584 = vpop.f32.mrf.mxu0
    %v585 = vadd.f32 %v510, %v584
    %v586 = vpop.f32.mrf.mxu0
    %587 = vdwg.mxu0
    %v589 = vsel %vm99, %v89, 0
    %591 = vmatprep.subr.mxu0 0.0
    %592 = vmatpush1.msra.mxu0 0.0
    %593 = vmatprep.subr.mxu0 0.0
    %594 = vmatpush1.msra.mxu0 0.0
    %595 = vmatprep.subr.mxu0 0.0
    %596 = vmatpush1.msra.mxu0 0.0
    %597 = vmatprep.subr.mxu0 0.0
    %598 = vmatpush1.msra.mxu0 0.0
    %599 = vmatprep.subr.mxu0 0.0
    %600 = vmatpush1.msra.mxu0 0.0
    %601 = vmatprep.subr.mxu0 0.0
    %602 = vmatpush1.msra.mxu0 0.0
    %603 = vmatprep.subr.mxu0 0.0
    %604 = vmatpush1.msra.mxu0 0.0
    %605 = vmatprep.subr.mxu0 0.0
    %606 = vmatpush1.msra.mxu0 0.0
    %607 = vmatprep.subr.mxu0 0.0
    %608 = vmatpush1.msra.mxu0 0.0
    %609 = vmatprep.subr.mxu0 0.0
    %610 = vmatpush1.msra.mxu0 0.0
    %611 = vmatprep.subr.mxu0 0.0
    %612 = vmatpush1.msra.mxu0 0.0
    %613 = vmatprep.subr.mxu0 0.0
    %614 = vmatpush1.msra.mxu0 0.0
    %615 = vmatprep.subr.mxu0 0.0
    %v616 = vand.u32 %v93, 4294901760
    %617 = vmatpush1.msra.mxu0 %v616
    %618 = vmatprep.subr.mxu0 0.0
    %v619 = vand.u32 %v92, 4294901760
    %620 = vmatpush1.msra.mxu0 %v619
    %621 = vmatprep.subr.mxu0 0.0
    %v622 = vand.u32 %v91, 4294901760
    %623 = vmatpush1.msra.mxu0 %v622
    %624 = vmatprep.subr.mxu0 0.0
    %v625 = vand.u32 %v90, 4294901760
    %626 = vmatpush1.msra.mxu0 %v625
    %627 = vmatprep.subr.mxu0 0.0
    %628 = vmatpush2.msra.mxu0 0.0
    %629 = vmatprep.subr.mxu0 0.0
    %630 = vmatpush2.msra.mxu0 0.0
    %631 = vmatprep.subr.mxu0 0.0
    %632 = vmatpush2.msra.mxu0 0.0
    %633 = vmatprep.subr.mxu0 0.0
    %634 = vmatpush2.msra.mxu0 0.0
    %635 = vmatprep.subr.mxu0 0.0
    %636 = vmatpush2.msra.mxu0 0.0
    %637 = vmatprep.subr.mxu0 0.0
    %638 = vmatpush2.msra.mxu0 0.0
    %639 = vmatprep.subr.mxu0 0.0
    %640 = vmatpush2.msra.mxu0 0.0
    %641 = vmatprep.subr.mxu0 0.0
    %642 = vmatpush2.msra.mxu0 0.0
    %643 = vmatprep.subr.mxu0 0.0
    %644 = vmatpush2.msra.mxu0 0.0
    %645 = vmatprep.subr.mxu0 0.0
    %646 = vmatpush2.msra.mxu0 0.0
    %647 = vmatprep.subr.mxu0 0.0
    %648 = vmatpush2.msra.mxu0 0.0
    %649 = vmatprep.subr.mxu0 0.0
    %650 = vmatpush2.msra.mxu0 0.0
    %651 = vmatprep.subr.mxu0 0.0
    %652 = vmatpush2.msra.mxu0 0.0
    %653 = vmatprep.subr.mxu0 0.0
    %654 = vmatpush2.msra.mxu0 0.0
    %655 = vmatprep.subr.mxu0 0.0
    %656 = vmatpush2.msra.mxu0 0.0
    %657 = vmatprep.subr.mxu0 0.0
    %658 = vmatpush2.msra.mxu0 0.0
    %659 = vmatprep.mubr.f32.mxu0 0.0
    %v660 = vand.u32 %v589, 4294901760
    %v661 = vsub.f32 %v589, %v660
    %v662 = vand.u32 %v661, 4294901760
    %v663 = vsub.f32 %v661, %v662
    %v664 = vand.u32 %v663, 4294901760
    %665 = vmatmul.mubr.f32.gmra.mxu0 %v664
    %v666 = vpop.f32.mrf.mxu0
    %v667 = vadd.f32 %v585, %v666
    %v668 = vpop.f32.mrf.mxu0
    %669 = vdwg.mxu0
    %670 = vmatprep.subr.mxu0 0.0
    %671 = vmatpush1.msra.mxu0 0.0
    %672 = vmatprep.subr.mxu0 0.0
    %673 = vmatpush1.msra.mxu0 0.0
    %674 = vmatprep.subr.mxu0 0.0
    %675 = vmatpush1.msra.mxu0 0.0
    %676 = vmatprep.subr.mxu0 0.0
    %677 = vmatpush1.msra.mxu0 0.0
    %678 = vmatprep.subr.mxu0 0.0
    %679 = vmatpush1.msra.mxu0 0.0
    %680 = vmatprep.subr.mxu0 0.0
    %681 = vmatpush1.msra.mxu0 0.0
    %682 = vmatprep.subr.mxu0 0.0
    %683 = vmatpush1.msra.mxu0 0.0
    %684 = vmatprep.subr.mxu0 0.0
    %685 = vmatpush1.msra.mxu0 0.0
    %686 = vmatprep.subr.mxu0 0.0
    %687 = vmatpush1.msra.mxu0 0.0
    %688 = vmatprep.subr.mxu0 0.0
    %689 = vmatpush1.msra.mxu0 0.0
    %690 = vmatprep.subr.mxu0 0.0
    %691 = vmatpush1.msra.mxu0 0.0
    %692 = vmatprep.subr.mxu0 0.0
    %693 = vmatpush1.msra.mxu0 0.0
    %694 = vmatprep.subr.mxu0 0.0
    %v695 = vand.u32 %v93, 4294901760
    %v696 = vsub.f32 %v93, %v695
    %v697 = vand.u32 %v696, 4294901760
    %v698 = vsub.f32 %v696, %v697
    %v699 = vand.u32 %v698, 4294901760
    %700 = vmatpush1.msra.mxu0 %v699
    %701 = vmatprep.subr.mxu0 0.0
    %v702 = vand.u32 %v92, 4294901760
    %v703 = vsub.f32 %v92, %v702
    %v704 = vand.u32 %v703, 4294901760
    %v705 = vsub.f32 %v703, %v704
    %v706 = vand.u32 %v705, 4294901760
    %707 = vmatpush1.msra.mxu0 %v706
    %708 = vmatprep.subr.mxu0 0.0
    %v709 = vand.u32 %v91, 4294901760
    %v710 = vsub.f32 %v91, %v709
    %v711 = vand.u32 %v710, 4294901760
    %v712 = vsub.f32 %v710, %v711
    %v713 = vand.u32 %v712, 4294901760
    %714 = vmatpush1.msra.mxu0 %v713
    %715 = vmatprep.subr.mxu0 0.0
    %v716 = vand.u32 %v90, 4294901760
    %v717 = vsub.f32 %v90, %v716
    %v718 = vand.u32 %v717, 4294901760
    %v719 = vsub.f32 %v717, %v718
    %v720 = vand.u32 %v719, 4294901760
    %721 = vmatpush1.msra.mxu0 %v720
    %722 = vmatprep.subr.mxu0 0.0
    %723 = vmatpush2.msra.mxu0 0.0
    %724 = vmatprep.subr.mxu0 0.0
    %725 = vmatpush2.msra.mxu0 0.0
    %726 = vmatprep.subr.mxu0 0.0
    %727 = vmatpush2.msra.mxu0 0.0
    %728 = vmatprep.subr.mxu0 0.0
    %729 = vmatpush2.msra.mxu0 0.0
    %730 = vmatprep.subr.mxu0 0.0
    %731 = vmatpush2.msra.mxu0 0.0
    %732 = vmatprep.subr.mxu0 0.0
    %733 = vmatpush2.msra.mxu0 0.0
    %734 = vmatprep.subr.mxu0 0.0
    %735 = vmatpush2.msra.mxu0 0.0
    %736 = vmatprep.subr.mxu0 0.0
    %737 = vmatpush2.msra.mxu0 0.0
    %738 = vmatprep.subr.mxu0 0.0
    %739 = vmatpush2.msra.mxu0 0.0
    %740 = vmatprep.subr.mxu0 0.0
    %741 = vmatpush2.msra.mxu0 0.0
    %742 = vmatprep.subr.mxu0 0.0
    %743 = vmatpush2.msra.mxu0 0.0
    %744 = vmatprep.subr.mxu0 0.0
    %745 = vmatpush2.msra.mxu0 0.0
    %746 = vmatprep.subr.mxu0 0.0
    %747 = vmatpush2.msra.mxu0 0.0
    %748 = vmatprep.subr.mxu0 0.0
    %749 = vmatpush2.msra.mxu0 0.0
    %750 = vmatprep.subr.mxu0 0.0
    %751 = vmatpush2.msra.mxu0 0.0
    %752 = vmatprep.subr.mxu0 0.0
    %753 = vmatpush2.msra.mxu0 0.0
    %754 = vmatprep.mubr.f32.mxu0 0.0
    %v755 = vand.u32 %v589, 4294901760
    %756 = vmatmul.mubr.f32.gmra.mxu0 %v755
    %v757 = vpop.f32.mrf.mxu0
    %v758 = vadd.f32 %v667, %v757
    %v759 = vpop.f32.mrf.mxu0
    %760 = vdwg.mxu0
    %761 = vmatprep.subr.mxu0 0.0
    %762 = vmatpush1.msra.mxu0 0.0
    %763 = vmatprep.subr.mxu0 0.0
    %764 = vmatpush1.msra.mxu0 0.0
    %765 = vmatprep.subr.mxu0 0.0
    %766 = vmatpush1.msra.mxu0 0.0
    %767 = vmatprep.subr.mxu0 0.0
    %768 = vmatpush1.msra.mxu0 0.0
    %769 = vmatprep.subr.mxu0 0.0
    %770 = vmatpush1.msra.mxu0 0.0
    %771 = vmatprep.subr.mxu0 0.0
    %772 = vmatpush1.msra.mxu0 0.0
    %773 = vmatprep.subr.mxu0 0.0
    %774 = vmatpush1.msra.mxu0 0.0
    %775 = vmatprep.subr.mxu0 0.0
    %776 = vmatpush1.msra.mxu0 0.0
    %777 = vmatprep.subr.mxu0 0.0
    %778 = vmatpush1.msra.mxu0 0.0
    %779 = vmatprep.subr.mxu0 0.0
    %780 = vmatpush1.msra.mxu0 0.0
    %781 = vmatprep.subr.mxu0 0.0
    %782 = vmatpush1.msra.mxu0 0.0
    %783 = vmatprep.subr.mxu0 0.0
    %784 = vmatpush1.msra.mxu0 0.0
    %785 = vmatprep.subr.mxu0 0.0
    %v786 = vand.u32 %v93, 4294901760
    %v787 = vsub.f32 %v93, %v786
    %788 = vmatpush1.msra.mxu0 %v787
    %789 = vmatprep.subr.mxu0 0.0
    %v790 = vand.u32 %v92, 4294901760
    %v791 = vsub.f32 %v92, %v790
    %792 = vmatpush1.msra.mxu0 %v791
    %793 = vmatprep.subr.mxu0 0.0
    %v794 = vand.u32 %v91, 4294901760
    %v795 = vsub.f32 %v91, %v794
    %796 = vmatpush1.msra.mxu0 %v795
    %797 = vmatprep.subr.mxu0 0.0
    %v798 = vand.u32 %v90, 4294901760
    %v799 = vsub.f32 %v90, %v798
    %800 = vmatpush1.msra.mxu0 %v799
    %801 = vmatprep.subr.mxu0 0.0
    %802 = vmatpush2.msra.mxu0 0.0
    %803 = vmatprep.subr.mxu0 0.0
    %804 = vmatpush2.msra.mxu0 0.0
    %805 = vmatprep.subr.mxu0 0.0
    %806 = vmatpush2.msra.mxu0 0.0
    %807 = vmatprep.subr.mxu0 0.0
    %808 = vmatpush2.msra.mxu0 0.0
    %809 = vmatprep.subr.mxu0 0.0
    %810 = vmatpush2.msra.mxu0 0.0
    %811 = vmatprep.subr.mxu0 0.0
    %812 = vmatpush2.msra.mxu0 0.0
    %813 = vmatprep.subr.mxu0 0.0
    %814 = vmatpush2.msra.mxu0 0.0
    %815 = vmatprep.subr.mxu0 0.0
    %816 = vmatpush2.msra.mxu0 0.0
    %817 = vmatprep.subr.mxu0 0.0
    %818 = vmatpush2.msra.mxu0 0.0
    %819 = vmatprep.subr.mxu0 0.0
    %820 = vmatpush2.msra.mxu0 0.0
    %821 = vmatprep.subr.mxu0 0.0
    %822 = vmatpush2.msra.mxu0 0.0
    %823 = vmatprep.subr.mxu0 0.0
    %824 = vmatpush2.msra.mxu0 0.0
    %825 = vmatprep.subr.mxu0 0.0
    %826 = vmatpush2.msra.mxu0 0.0
    %827 = vmatprep.subr.mxu0 0.0
    %828 = vmatpush2.msra.mxu0 0.0
    %829 = vmatprep.subr.mxu0 0.0
    %830 = vmatpush2.msra.mxu0 0.0
    %831 = vmatprep.subr.mxu0 0.0
    %832 = vmatpush2.msra.mxu0 0.0
    %833 = vmatprep.mubr.f32.mxu0 0.0
    %v834 = vand.u32 %v589, 4294901760
    %v835 = vsub.f32 %v589, %v834
    %836 = vmatmul.mubr.f32.gmra.mxu0 %v835
    %v837 = vpop.f32.mrf.mxu0
    %v838 = vadd.f32 %v758, %v837
    %v839 = vpop.f32.mrf.mxu0
    %840 = vdwg.mxu0
    %841 = vmatprep.subr.mxu0 0.0
    %842 = vmatpush1.msra.mxu0 0.0
    %843 = vmatprep.subr.mxu0 0.0
    %844 = vmatpush1.msra.mxu0 0.0
    %845 = vmatprep.subr.mxu0 0.0
    %846 = vmatpush1.msra.mxu0 0.0
    %847 = vmatprep.subr.mxu0 0.0
    %848 = vmatpush1.msra.mxu0 0.0
    %849 = vmatprep.subr.mxu0 0.0
    %850 = vmatpush1.msra.mxu0 0.0
    %851 = vmatprep.subr.mxu0 0.0
    %852 = vmatpush1.msra.mxu0 0.0
    %853 = vmatprep.subr.mxu0 0.0
    %854 = vmatpush1.msra.mxu0 0.0
    %855 = vmatprep.subr.mxu0 0.0
    %856 = vmatpush1.msra.mxu0 0.0
    %857 = vmatprep.subr.mxu0 0.0
    %858 = vmatpush1.msra.mxu0 0.0
    %859 = vmatprep.subr.mxu0 0.0
    %860 = vmatpush1.msra.mxu0 0.0
    %861 = vmatprep.subr.mxu0 0.0
    %862 = vmatpush1.msra.mxu0 0.0
    %863 = vmatprep.subr.mxu0 0.0
    %864 = vmatpush1.msra.mxu0 0.0
    %865 = vmatprep.subr.mxu0 0.0
    %v866 = vand.u32 %v93, 4294901760
    %867 = vmatpush1.msra.mxu0 %v866
    %868 = vmatprep.subr.mxu0 0.0
    %v869 = vand.u32 %v92, 4294901760
    %870 = vmatpush1.msra.mxu0 %v869
    %871 = vmatprep.subr.mxu0 0.0
    %v872 = vand.u32 %v91, 4294901760
    %873 = vmatpush1.msra.mxu0 %v872
    %874 = vmatprep.subr.mxu0 0.0
    %v875 = vand.u32 %v90, 4294901760
    %876 = vmatpush1.msra.mxu0 %v875
    %877 = vmatprep.subr.mxu0 0.0
    %878 = vmatpush2.msra.mxu0 0.0
    %879 = vmatprep.subr.mxu0 0.0
    %880 = vmatpush2.msra.mxu0 0.0
    %881 = vmatprep.subr.mxu0 0.0
    %882 = vmatpush2.msra.mxu0 0.0
    %883 = vmatprep.subr.mxu0 0.0
    %884 = vmatpush2.msra.mxu0 0.0
    %885 = vmatprep.subr.mxu0 0.0
    %886 = vmatpush2.msra.mxu0 0.0
    %887 = vmatprep.subr.mxu0 0.0
    %888 = vmatpush2.msra.mxu0 0.0
    %889 = vmatprep.subr.mxu0 0.0
    %890 = vmatpush2.msra.mxu0 0.0
    %891 = vmatprep.subr.mxu0 0.0
    %892 = vmatpush2.msra.mxu0 0.0
    %893 = vmatprep.subr.mxu0 0.0
    %894 = vmatpush2.msra.mxu0 0.0
    %895 = vmatprep.subr.mxu0 0.0
    %896 = vmatpush2.msra.mxu0 0.0
    %897 = vmatprep.subr.mxu0 0.0
    %898 = vmatpush2.msra.mxu0 0.0
    %899 = vmatprep.subr.mxu0 0.0
    %900 = vmatpush2.msra.mxu0 0.0
    %901 = vmatprep.subr.mxu0 0.0
    %902 = vmatpush2.msra.mxu0 0.0
    %903 = vmatprep.subr.mxu0 0.0
    %904 = vmatpush2.msra.mxu0 0.0
    %905 = vmatprep.subr.mxu0 0.0
    %906 = vmatpush2.msra.mxu0 0.0
    %907 = vmatprep.subr.mxu0 0.0
    %908 = vmatpush2.msra.mxu0 0.0
    %909 = vmatprep.mubr.f32.mxu0 0.0
    %v910 = vand.u32 %v589, 4294901760
    %v911 = vsub.f32 %v589, %v910
    %v912 = vand.u32 %v911, 4294901760
    %913 = vmatmul.mubr.f32.gmra.mxu0 %v912
    %v914 = vpop.f32.mrf.mxu0
    %v915 = vadd.f32 %v838, %v914
    %v916 = vpop.f32.mrf.mxu0
    %917 = vdwg.mxu0
    %918 = vmatprep.subr.mxu0 0.0
    %919 = vmatpush1.msra.mxu0 0.0
    %920 = vmatprep.subr.mxu0 0.0
    %921 = vmatpush1.msra.mxu0 0.0
    %922 = vmatprep.subr.mxu0 0.0
    %923 = vmatpush1.msra.mxu0 0.0
    %924 = vmatprep.subr.mxu0 0.0
    %925 = vmatpush1.msra.mxu0 0.0
    %926 = vmatprep.subr.mxu0 0.0
    %927 = vmatpush1.msra.mxu0 0.0
    %928 = vmatprep.subr.mxu0 0.0
    %929 = vmatpush1.msra.mxu0 0.0
    %930 = vmatprep.subr.mxu0 0.0
    %931 = vmatpush1.msra.mxu0 0.0
    %932 = vmatprep.subr.mxu0 0.0
    %933 = vmatpush1.msra.mxu0 0.0
    %934 = vmatprep.subr.mxu0 0.0
    %935 = vmatpush1.msra.mxu0 0.0
    %936 = vmatprep.subr.mxu0 0.0
    %937 = vmatpush1.msra.mxu0 0.0
    %938 = vmatprep.subr.mxu0 0.0
    %939 = vmatpush1.msra.mxu0 0.0
    %940 = vmatprep.subr.mxu0 0.0
    %941 = vmatpush1.msra.mxu0 0.0
    %942 = vmatprep.subr.mxu0 0.0
    %v943 = vand.u32 %v93, 4294901760
    %v944 = vsub.f32 %v93, %v943
    %v945 = vand.u32 %v944, 4294901760
    %946 = vmatpush1.msra.mxu0 %v945
    %947 = vmatprep.subr.mxu0 0.0
    %v948 = vand.u32 %v92, 4294901760
    %v949 = vsub.f32 %v92, %v948
    %v950 = vand.u32 %v949, 4294901760
    %951 = vmatpush1.msra.mxu0 %v950
    %952 = vmatprep.subr.mxu0 0.0
    %v953 = vand.u32 %v91, 4294901760
    %v954 = vsub.f32 %v91, %v953
    %v955 = vand.u32 %v954, 4294901760
    %956 = vmatpush1.msra.mxu0 %v955
    %957 = vmatprep.subr.mxu0 0.0
    %v958 = vand.u32 %v90, 4294901760
    %v959 = vsub.f32 %v90, %v958
    %v960 = vand.u32 %v959, 4294901760
    %961 = vmatpush1.msra.mxu0 %v960
    %962 = vmatprep.subr.mxu0 0.0
    %963 = vmatpush2.msra.mxu0 0.0
    %964 = vmatprep.subr.mxu0 0.0
    %965 = vmatpush2.msra.mxu0 0.0
    %966 = vmatprep.subr.mxu0 0.0
    %967 = vmatpush2.msra.mxu0 0.0
    %968 = vmatprep.subr.mxu0 0.0
    %969 = vmatpush2.msra.mxu0 0.0
    %970 = vmatprep.subr.mxu0 0.0
    %971 = vmatpush2.msra.mxu0 0.0
    %972 = vmatprep.subr.mxu0 0.0
    %973 = vmatpush2.msra.mxu0 0.0
    %974 = vmatprep.subr.mxu0 0.0
    %975 = vmatpush2.msra.mxu0 0.0
    %976 = vmatprep.subr.mxu0 0.0
    %977 = vmatpush2.msra.mxu0 0.0
    %978 = vmatprep.subr.mxu0 0.0
    %979 = vmatpush2.msra.mxu0 0.0
    %980 = vmatprep.subr.mxu0 0.0
    %981 = vmatpush2.msra.mxu0 0.0
    %982 = vmatprep.subr.mxu0 0.0
    %983 = vmatpush2.msra.mxu0 0.0
    %984 = vmatprep.subr.mxu0 0.0
    %985 = vmatpush2.msra.mxu0 0.0
    %986 = vmatprep.subr.mxu0 0.0
    %987 = vmatpush2.msra.mxu0 0.0
    %988 = vmatprep.subr.mxu0 0.0
    %989 = vmatpush2.msra.mxu0 0.0
    %990 = vmatprep.subr.mxu0 0.0
    %991 = vmatpush2.msra.mxu0 0.0
    %992 = vmatprep.subr.mxu0 0.0
    %993 = vmatpush2.msra.mxu0 0.0
    %994 = vmatprep.mubr.f32.mxu0 0.0
    %v995 = vand.u32 %v589, 4294901760
    %996 = vmatmul.mubr.f32.gmra.mxu0 %v995
    %v997 = vpop.f32.mrf.mxu0
    %v998 = vadd.f32 %v915, %v997
    %v999 = vpop.f32.mrf.mxu0
    %1000 = vdwg.mxu0
    %1001 = vmatprep.subr.mxu0 0.0
    %1002 = vmatpush1.msra.mxu0 0.0
    %1003 = vmatprep.subr.mxu0 0.0
    %1004 = vmatpush1.msra.mxu0 0.0
    %1005 = vmatprep.subr.mxu0 0.0
    %1006 = vmatpush1.msra.mxu0 0.0
    %1007 = vmatprep.subr.mxu0 0.0
    %1008 = vmatpush1.msra.mxu0 0.0
    %1009 = vmatprep.subr.mxu0 0.0
    %1010 = vmatpush1.msra.mxu0 0.0
    %1011 = vmatprep.subr.mxu0 0.0
    %1012 = vmatpush1.msra.mxu0 0.0
    %1013 = vmatprep.subr.mxu0 0.0
    %1014 = vmatpush1.msra.mxu0 0.0
    %1015 = vmatprep.subr.mxu0 0.0
    %1016 = vmatpush1.msra.mxu0 0.0
    %1017 = vmatprep.subr.mxu0 0.0
    %1018 = vmatpush1.msra.mxu0 0.0
    %1019 = vmatprep.subr.mxu0 0.0
    %1020 = vmatpush1.msra.mxu0 0.0
    %1021 = vmatprep.subr.mxu0 0.0
    %1022 = vmatpush1.msra.mxu0 0.0
    %1023 = vmatprep.subr.mxu0 0.0
    %1024 = vmatpush1.msra.mxu0 0.0
    %1025 = vmatprep.subr.mxu0 0.0
    %v1026 = vand.u32 %v93, 4294901760
    %1027 = vmatpush1.msra.mxu0 %v1026
    %1028 = vmatprep.subr.mxu0 0.0
    %v1029 = vand.u32 %v92, 4294901760
    %1030 = vmatpush1.msra.mxu0 %v1029
    %1031 = vmatprep.subr.mxu0 0.0
    %v1032 = vand.u32 %v91, 4294901760
    %1033 = vmatpush1.msra.mxu0 %v1032
    %1034 = vmatprep.subr.mxu0 0.0
    %v1035 = vand.u32 %v90, 4294901760
    %1036 = vmatpush1.msra.mxu0 %v1035
    %1037 = vmatprep.subr.mxu0 0.0
    %1038 = vmatpush2.msra.mxu0 0.0
    %1039 = vmatprep.subr.mxu0 0.0
    %1040 = vmatpush2.msra.mxu0 0.0
    %1041 = vmatprep.subr.mxu0 0.0
    %1042 = vmatpush2.msra.mxu0 0.0
    %1043 = vmatprep.subr.mxu0 0.0
    %1044 = vmatpush2.msra.mxu0 0.0
    %1045 = vmatprep.subr.mxu0 0.0
    %1046 = vmatpush2.msra.mxu0 0.0
    %1047 = vmatprep.subr.mxu0 0.0
    %1048 = vmatpush2.msra.mxu0 0.0
    %1049 = vmatprep.subr.mxu0 0.0
    %1050 = vmatpush2.msra.mxu0 0.0
    %1051 = vmatprep.subr.mxu0 0.0
    %1052 = vmatpush2.msra.mxu0 0.0
    %1053 = vmatprep.subr.mxu0 0.0
    %1054 = vmatpush2.msra.mxu0 0.0
    %1055 = vmatprep.subr.mxu0 0.0
    %1056 = vmatpush2.msra.mxu0 0.0
    %1057 = vmatprep.subr.mxu0 0.0
    %1058 = vmatpush2.msra.mxu0 0.0
    %1059 = vmatprep.subr.mxu0 0.0
    %1060 = vmatpush2.msra.mxu0 0.0
    %1061 = vmatprep.subr.mxu0 0.0
    %1062 = vmatpush2.msra.mxu0 0.0
    %1063 = vmatprep.subr.mxu0 0.0
    %1064 = vmatpush2.msra.mxu0 0.0
    %1065 = vmatprep.subr.mxu0 0.0
    %1066 = vmatpush2.msra.mxu0 0.0
    %1067 = vmatprep.subr.mxu0 0.0
    %1068 = vmatpush2.msra.mxu0 0.0
    %1069 = vmatprep.mubr.f32.mxu0 0.0
    %v1070 = vand.u32 %v589, 4294901760
    %1071 = vmatmul.mubr.f32.gmra.mxu0 %v1070
    %v1072 = vpop.f32.mrf.mxu0
    %v1073 = vadd.f32 %v998, %v1072
    %v1074 = vpop.f32.mrf.mxu0
    %1075 = vdwg.mxu0
    %v1076 = vld [vmem:[%s5] sm:$0x1]
    %v1078 = vlaneseq
    %v1079 = vshrl.u32 %v1078, 7
    %v1080 = vsub.s32 0, %v1079
    %v1081 = vrot.slane %v1076, %v1080
    %v1083 = vadd.f32 %v1073, %v1081
    %v1084 = vxor.u32 %v1083, 2147483648
    %v1085 = vmul.f32 %v1084, 1.442695
    %v1086 = vpow.pop %v1085
    %v1087 = vadd.f32 %v1086, 1.0
    %v1088 = vrcp.pop %v1087
    %v1089 = vmul.f32 1.0, %v1088
    %v1090 = vtanh.pop %v1083
    %v1091 = vld [vmem:[#allocation7] sm:$0xff]
    %1093 = vrot.lane.b32.xlu0 %v1091, 32
    %v1094 = vpop.permute.xlu0 %1093
    %v1096 = vmul.f32 %v1089, %v1094
    %1098 = vrot.lane.b32.xlu0 %v1090, 64
    %v1099 = vpop.permute.xlu0 %1098
    %v1101 = vmul.f32 %v1089, %v1099
    %1103 = vrot.lane.b32.xlu0 %v1101, 32
    %v1104 = vpop.permute.xlu0 %1103
    %v1106 = vadd.f32 %v1096, %v1104
    %v1107 = vtanh.pop %v1106
    %1109 = vrot.lane.b32.xlu0 %v1107, 64
    %v1110 = vpop.permute.xlu0 %1109
    %v1112 = vmul.f32 %v1089, %v1110
    %1114 = vrot.lane.b32.xlu0 %v1112, 32
    %v1115 = vpop.permute.xlu0 %1114
    %1117 = vst.msk [vmem:[#allocation11] sm:$0xff] %vm99, %v1115
    %1119 = vrot.lane.b32.xlu0 %v1106, 96
    %v1120 = vpop.permute.xlu0 %1119
    %1122 = vst.msk [vmem:[#allocation12] sm:$0xff] %vm99, %v1120
    // Predicated region
    $region46: #{tpu_custom_call.1} parent=1 // pred_check
      _
    $region47: #{tpu_custom_call.1} parent=1 // pred_check_branch
      %1124 = sbr.rel (0) target = $region49
    $region48: #{tpu_custom_call.1} parent=1 // pred_region
      %s1126 = ssub.s32 128, 128
      %1127 = vsyncadd [#allocation4], %s1126
      %s1129 = sshll.u32 [#allocation11], 4
      %s1130 = int_to_ptr.vmem [resolvable:$true] %s1129
      %1132 = dma.vmem_to_hbm [thread:$0]  %s1130, 128, %s6, [#allocation4]
    $region49: #{tpu_custom_call.1} parent=1 // pred_fallthru
      _
    // Predicated region
    $region50: #{tpu_custom_call.1} parent=1 // pred_check
      _
    $region51: #{tpu_custom_call.1} parent=1 // pred_check_branch
      %1134 = sbr.rel (0) target = $region53
    $region52: #{tpu_custom_call.1} parent=1 // pred_region
      %s1136 = ssub.s32 128, 128
      %1137 = vsyncadd [#allocation13], %s1136
      %s1139 = sshll.u32 [#allocation12], 4
      %s1140 = int_to_ptr.vmem [resolvable:$true] %s1139
      %1142 = dma.vmem_to_hbm [thread:$0]  %s1140, 128, %s7, [#allocation13]
    $region53: #{tpu_custom_call.1} parent=1 // pred_fallthru
      _
    // Predicated region
    $region54: #{tpu_custom_call.1} parent=1 // pred_check
      _
    $region55: #{tpu_custom_call.1} parent=1 // pred_check_branch
      %1144 = sbr.rel (0) target = $region57
    $region56: #{tpu_custom_call.1} parent=1 // pred_region
      %1145 = dma.done [#allocation4], 128
    $region57: #{tpu_custom_call.1} parent=1 // pred_fallthru
      _
    // Predicated region
    $region58: #{tpu_custom_call.1} parent=1 // pred_check
      _
    $region59: #{tpu_custom_call.1} parent=1 // pred_check_branch
      %1147 = sbr.rel (0) target = $region61
    $region60: #{tpu_custom_call.1} parent=1 // pred_region
      %1148 = dma.done [#allocation13], 128
    $region61: #{tpu_custom_call.1} parent=1 // pred_fallthru
      _
    %1149 = vsyncpa [#allocation3], 1
    %1150 = vsyncpa [#allocation6], 1
    %1151 = vsyncpa [#allocation9], 1
    %1152 = vsyncpa [#allocation4], 1
    %1153 = vsyncpa [#allocation13], 1

</llo_original>
